<compile_context>
chip_gen: v6e
topology: v6e:2x2x1
jax: 0.10.0
libtpu: 0.0.40
codegen_flags: <defaults>
</compile_context>

<pallas_src>
import functools

import jax
import jax.numpy as jnp
from jax.experimental import pallas as pl
from jax.experimental.pallas import tpu as pltpu


def _nonlinear_head_kernel(x_ref, w1_ref, b1_ref, w2_ref, b2_ref, o_ref):
    # Linear 1 (+ folded BN affine) + bias + ReLU.  f32 accumulation.
    h = jnp.dot(x_ref[...], w1_ref[...], preferred_element_type=jnp.float32)
    h = jnp.maximum(h + b1_ref[...], 0.0)

    # Linear 2.  Cast only the MXU operand to the weight dtype (no-op for f32).
    out = jnp.dot(h.astype(w2_ref.dtype), w2_ref[...],
                  preferred_element_type=jnp.float32)
    out = out + b2_ref[...]

    # Store only the real O columns -> contiguous (bn, O) DMA, no padded write.
    o_ref[...] = out.astype(o_ref.dtype)


def _pad_lanes(a, rows, cols):
    out = jnp.zeros((rows, cols), a.dtype)
    return out.at[: a.shape[0], : a.shape[1]].set(a)


def prepare_nonlinear_head_params(gamma, beta, running_mean, running_var,
                                  w1, b1, w2, b2, *, eps=1e-5,
                                  weight_dtype=jnp.float32):
    """One-time fold of eval-mode BN into Linear1 + hidden-lane padding.

    Call this once at model load; the returned tuple is what
    nonlinear_head() consumes, so the per-call path is a single pallas_call.
    """
    f32 = jnp.float32
    F, H = w1.shape
    O = w2.shape[1]

    # Exact algebraic fold of eval-mode BatchNorm into the first Linear.
    inv_std = 1.0 / jnp.sqrt(running_var.astype(f32) + eps)
    scale = gamma.astype(f32) * inv_std                      # [F]
    shift = beta.astype(f32) - running_mean.astype(f32) * scale
    w1f = scale[:, None] * w1.astype(f32)                    # [F, H]
    b1f = b1.astype(f32) + shift @ w1.astype(f32)            # [H]

    # Pad only the hidden dim to 128 lanes (VMEM-only lane density; output
    # feature dim is left unpadded so the HBM write is exactly N*O).
    Hp = ((H + 127) // 128) * 128
    w1p = _pad_lanes(w1f, F, Hp).astype(weight_dtype)         # [F, Hp]
    b1p = _pad_lanes(b1f.reshape(1, H), 1, Hp)                # [1, Hp] f32
    w2p = _pad_lanes(w2.astype(f32), Hp, O).astype(weight_dtype)  # [Hp, O]
    b2p = b2.astype(f32).reshape(1, O)                        # [1, O]  f32

    return w1p, b1p, w2p, b2p


@functools.partial(jax.jit, static_argnames=("block_n", "out_dtype"))
def nonlinear_head(x, w1p, b1p, w2p, b2p, *, block_n=4096, out_dtype=None):
    """x: [N, 2H] -> [N, O].  Params must come from prepare_nonlinear_head_params."""
    N, F = x.shape
    Hp = w1p.shape[1]
    O = w2p.shape[1]
    out_dtype = x.dtype if out_dtype is None else jnp.dtype(out_dtype)

    # Row tile: as large as the batch allows (amortizes ~0.35 us/step pipeline
    # overhead), sublane-aligned.  For N not a multiple of 8 we rely on
    # Pallas partial-block masking for the trailing rows (garbage input rows
    # only feed masked-out output rows).
    bn = min(int(block_n), ((N + 7) // 8) * 8)
    bn = max(8, (bn // 8) * 8)
    grid = (pl.cdiv(N, bn),)

    # VMEM budget from the actual tile footprint (double-buffered streams +
    # resident weights + intermediate), with headroom.
    x_item = jnp.dtype(x.dtype).itemsize
    o_item = out_dtype.itemsize
    footprint = (
        2 * bn * F * x_item                       # x tile, double-buffered
        + 2 * bn * O * o_item                     # out tile, double-buffered
        + 2 * (w1p.size * w1p.dtype.itemsize + b1p.size * 4
               + w2p.size * w2p.dtype.itemsize + b2p.size * 4)
        + bn * Hp * 4                             # intermediate h (f32)
    )
    vmem_limit = int(min(max(footprint + (4 << 20), 16 << 20), 64 << 20))

    cost = pl.CostEstimate(
        flops=2 * N * (F * Hp + Hp * O),
        transcendentals=0,
        bytes_accessed=(N * F * x_item + N * O * o_item
                        + w1p.size * w1p.dtype.itemsize
                        + w2p.size * w2p.dtype.itemsize
                        + (b1p.size + b2p.size) * 4),
    )

    return pl.pallas_call(
        _nonlinear_head_kernel,
        out_shape=jax.ShapeDtypeStruct((N, O), out_dtype),
        grid_spec=pltpu.PrefetchScalarGridSpec(
            num_scalar_prefetch=0,
            grid=grid,
            in_specs=[
                pl.BlockSpec((bn, F), lambda i: (i, 0)),    # x tile (streamed)
                pl.BlockSpec((F, Hp), lambda i: (0, 0)),    # w1 (resident, const idx)
                pl.BlockSpec((1, Hp), lambda i: (0, 0)),    # b1
                pl.BlockSpec((Hp, O), lambda i: (0, 0)),    # w2
                pl.BlockSpec((1, O), lambda i: (0, 0)),     # b2
            ],
            out_specs=pl.BlockSpec((bn, O), lambda i: (i, 0)),  # unpadded write
        ),
        compiler_params=pltpu.CompilerParams(
            dimension_semantics=("parallel",),
            vmem_limit_bytes=vmem_limit,
        ),
        cost_estimate=cost,
    )(x, w1p, b1p, w2p, b2p)


def _reference(x, gamma, beta, running_mean, running_var, w1, b1, w2, b2,
               eps=1e-5):
    xn = (x - running_mean) / jnp.sqrt(running_var + eps) * gamma + beta
    h = jnp.maximum(xn @ w1 + b1, 0.0)
    return h @ w2 + b2


if __name__ == "__main__":
    # Small shapes consistent with the module: input_size=32, output_size=16.
    input_size = 32
    output_size = 16
    F = 2 * input_size  # BatchNorm1d / first Linear input features

    key = jax.random.PRNGKey(0)
    keys = jax.random.split(key, 8)

    # BatchNorm1d(2*input_size) parameters & running stats (deterministic).
    gamma = 1.0 + 0.1 * jax.random.normal(keys[1], (F,), dtype=jnp.float32)
    beta = 0.1 * jax.random.normal(keys[2], (F,), dtype=jnp.float32)
    running_mean = 0.1 * jax.random.normal(keys[3], (F,), dtype=jnp.float32)
    running_var = jnp.abs(1.0 + 0.1 * jax.random.normal(
        keys[4], (F,), dtype=jnp.float32))

    # Linear(2H, H) and Linear(H, O), stored as [in, out].
    w1 = jax.random.normal(keys[5], (F, input_size), dtype=jnp.float32) * 0.05
    b1 = 0.01 * jax.random.normal(keys[6], (input_size,), dtype=jnp.float32)
    w2 = jax.random.normal(keys[7], (input_size, output_size),
                           dtype=jnp.float32) * 0.05
    b2 = jnp.zeros((output_size,), dtype=jnp.float32)

    # Fold BN + pad once (model-load time), not per call.
    params = prepare_nonlinear_head_params(
        gamma, beta, running_mean, running_var, w1, b1, w2, b2)
    params = jax.tree_util.tree_map(jax.block_until_ready, params)

    ok = True
    # Single-block path (N=8) and multi-block / partial-tile path (N=40).
    for N in (8, 40):
        x = jax.random.normal(keys[0], (N, F), dtype=jnp.float32)
        out = nonlinear_head(x, *params, block_n=32)
        out = jax.block_until_ready(out)
        ref = _reference(x, gamma, beta, running_mean, running_var,
                         w1, b1, w2, b2)
        ok = ok and out.shape == (N, output_size)
        ok = ok and bool(jnp.allclose(out, ref, atol=1e-4, rtol=1e-4))

    assert ok
    print("KERNEL_OK")
</pallas_src>

<mosaic_0001>
module attributes {stable_mosaic.version = 11 : i64} {
  func.func @_nonlinear_head_kernel(%arg0: i32, %arg1: memref<8x64xf32, #tpu.memory_space<vmem>>, %arg2: memref<64x128xf32, #tpu.memory_space<vmem>>, %arg3: memref<1x128xf32, #tpu.memory_space<vmem>>, %arg4: memref<128x16xf32, #tpu.memory_space<vmem>>, %arg5: memref<1x16xf32, #tpu.memory_space<vmem>>, %arg6: memref<8x16xf32, #tpu.memory_space<vmem>>) attributes {dimension_semantics = [#tpu.dimension_semantics<parallel>], iteration_bounds = array<i64: 1>, scalar_prefetch = 0 : i64, scratch_operands = 0 : i64, tpu.core_type = #tpu.core_type<tc>, window_params = [{transform_indices = @transform_0, window_bounds = array<i64: 8, 64>}, {pipeline_mode = #tpu.pipeline_mode<synchronous>, transform_indices = @transform_1, window_bounds = array<i64: 64, 128>}, {pipeline_mode = #tpu.pipeline_mode<synchronous>, transform_indices = @transform_2, window_bounds = array<i64: 1, 128>}, {pipeline_mode = #tpu.pipeline_mode<synchronous>, transform_indices = @transform_3, window_bounds = array<i64: 128, 16>}, {pipeline_mode = #tpu.pipeline_mode<synchronous>, transform_indices = @transform_4, window_bounds = array<i64: 1, 16>}, {transform_indices = @transform_5, window_bounds = array<i64: 8, 16>}]} {
    %c0 = arith.constant 0 : index
    %c0_0 = arith.constant 0 : index
    %0 = vector.load %arg1[%c0, %c0_0] : memref<8x64xf32, #tpu.memory_space<vmem>>, vector<8x64xf32>
    %c0_1 = arith.constant 0 : index
    %c0_2 = arith.constant 0 : index
    %1 = vector.load %arg2[%c0_1, %c0_2] : memref<64x128xf32, #tpu.memory_space<vmem>>, vector<64x128xf32>
    %cst = arith.constant dense<0.000000e+00> : vector<8x128xf32>
    %2 = tpu.matmul %0, %1, %cst {dimension_numbers = #tpu.dot_dimension_numbers<[1], [0], [0], [1], [0, 0, 1, 1], [], []>} : vector<8x64xf32>, vector<64x128xf32>, vector<8x128xf32> -> vector<8x128xf32>
    %c0_3 = arith.constant 0 : index
    %c0_4 = arith.constant 0 : index
    %3 = vector.load %arg3[%c0_3, %c0_4] : memref<1x128xf32, #tpu.memory_space<vmem>>, vector<1x128xf32>
    %4 = vector.broadcast %3 : vector<1x128xf32> to vector<8x128xf32>
    %5 = arith.addf %2, %4 : vector<8x128xf32>
    %cst_5 = arith.constant 0.000000e+00 : f32
    %6 = vector.broadcast %cst_5 : f32 to vector<8x128xf32>
    %7 = arith.maximumf %5, %6 : vector<8x128xf32>
    %c0_6 = arith.constant 0 : index
    %c0_7 = arith.constant 0 : index
    %8 = vector.load %arg4[%c0_6, %c0_7] : memref<128x16xf32, #tpu.memory_space<vmem>>, vector<128x16xf32>
    %cst_8 = arith.constant dense<0.000000e+00> : vector<8x16xf32>
    %9 = tpu.matmul %7, %8, %cst_8 {dimension_numbers = #tpu.dot_dimension_numbers<[1], [0], [0], [1], [0, 0, 1, 1], [], []>} : vector<8x128xf32>, vector<128x16xf32>, vector<8x16xf32> -> vector<8x16xf32>
    %c0_9 = arith.constant 0 : index
    %c0_10 = arith.constant 0 : index
    %10 = vector.load %arg5[%c0_9, %c0_10] : memref<1x16xf32, #tpu.memory_space<vmem>>, vector<1x16xf32>
    %11 = vector.broadcast %10 : vector<1x16xf32> to vector<8x16xf32>
    %12 = arith.addf %9, %11 : vector<8x16xf32>
    %c0_11 = arith.constant 0 : index
    %c0_12 = arith.constant 0 : index
    %13 = vector.load %arg6[%c0_11, %c0_12] : memref<8x16xf32, #tpu.memory_space<vmem>>, vector<8x16xf32>
    tpu.vector_store %arg6[%c0_11, %c0_12], %12 {strides = array<i32>} : memref<8x16xf32, #tpu.memory_space<vmem>>, vector<8x16xf32>,
    return
  }
  func.func @transform_0(%arg0: i32) -> (i32, i32) {
    %c0_i32 = arith.constant 0 : i32
    %c0_i32_0 = arith.constant 0 : i32
    return %arg0, %c0_i32 : i32, i32
  }
  func.func @transform_1(%arg0: i32) -> (i32, i32) {
    %c0_i32 = arith.constant 0 : i32
    %c0_i32_0 = arith.constant 0 : i32
    %c0_i32_1 = arith.constant 0 : i32
    return %c0_i32, %c0_i32_0 : i32, i32
  }
  func.func @transform_2(%arg0: i32) -> (i32, i32) {
    %c0_i32 = arith.constant 0 : i32
    %c0_i32_0 = arith.constant 0 : i32
    %c0_i32_1 = arith.constant 0 : i32
    return %c0_i32, %c0_i32_0 : i32, i32
  }
  func.func @transform_3(%arg0: i32) -> (i32, i32) {
    %c0_i32 = arith.constant 0 : i32
    %c0_i32_0 = arith.constant 0 : i32
    %c0_i32_1 = arith.constant 0 : i32
    return %c0_i32, %c0_i32_0 : i32, i32
  }
  func.func @transform_4(%arg0: i32) -> (i32, i32) {
    %c0_i32 = arith.constant 0 : i32
    %c0_i32_0 = arith.constant 0 : i32
    %c0_i32_1 = arith.constant 0 : i32
    return %c0_i32, %c0_i32_0 : i32, i32
  }
  func.func @transform_5(%arg0: i32) -> (i32, i32) {
    %c0_i32 = arith.constant 0 : i32
    %c0_i32_0 = arith.constant 0 : i32
    return %arg0, %c0_i32 : i32, i32
  }
}

</mosaic_0001>

<llo_original>
// kernel: nonlinear_head.1
$region0: #{nonlinear_head.1}
  #allocation0 [shape = 'u32[]', space=smem, size = 0x4, offset = 0x4, fixed_abs, tag = 'smem constant byte address 0x4 - core index']
  #allocation1 [shape = 'u32[144,128]{1,0:T(1,128)}', space=vmem, size = 0x12000, scoped, tag = 'internal scratch']
  %s0 = inlined_call_operand.vmem [shape: f32[8,64], index: 0, kind: input, shape index: {}]
  %s1 = inlined_call_operand.vmem [shape: f32[64,128], index: 1, kind: input, shape index: {}]
  %s2 = inlined_call_operand.vmem [shape: f32[1,128], index: 2, kind: input, shape index: {}]
  %s3 = inlined_call_operand.vmem [shape: f32[128,16], index: 3, kind: input, shape index: {}]
  %s4 = inlined_call_operand.vmem [shape: f32[1,16], index: 4, kind: input, shape index: {}]
  %s5 = inlined_call_operand.hbm [shape: f32[8,16], index: 5, kind: output, shape index: {}]
  %s6 = sld [smem:[#allocation0]]
  $region30: #{nonlinear_head.1} parent=0
    _
  %s8 = ssub.s32 1, %s6
  %s9 = scalar_select 0, %s8, %s6
  $region1: #{nonlinear_head.1} parent=0
    #allocation2 [shape = 'u8[4096]{0}', space=vmem, size = 0x1000, scoped, tag = 'output window, operand 0, single buffered']
    #allocation3 [shape = 's32[1]{0}', space=sflag, size = 0x4, scoped, tag = 'scoped memory for nonlinear_head.1']
    %10 = vsyncpa [#allocation3], 0
    // Predicated region
    $region2: #{nonlinear_head.1} parent=1 // pred_check
      _
    $region3: #{nonlinear_head.1} parent=1 // pred_check_branch
      %12 = sbr.rel (0) target = $region5
    $region4: #{nonlinear_head.1} parent=1 // pred_region
      _
    $region5: #{nonlinear_head.1} parent=1 // pred_fallthru
      _
    // Predicated region
    $region6: #{nonlinear_head.1} parent=1 // pred_check
      _
    $region7: #{nonlinear_head.1} parent=1 // pred_check_branch
      %14 = sbr.rel (0) target = $region9
    $region8: #{nonlinear_head.1} parent=1 // pred_region
      _
    $region9: #{nonlinear_head.1} parent=1 // pred_fallthru
      _
    // Predicated region
    $region10: #{nonlinear_head.1} parent=1 // pred_check
      _
    $region11: #{nonlinear_head.1} parent=1 // pred_check_branch
      %16 = sbr.rel (0) target = $region13
    $region12: #{nonlinear_head.1} parent=1 // pred_region
      _
    $region13: #{nonlinear_head.1} parent=1 // pred_fallthru
      _
    // Predicated region
    $region14: #{nonlinear_head.1} parent=1 // pred_check
      _
    $region15: #{nonlinear_head.1} parent=1 // pred_check_branch
      %18 = sbr.rel (0) target = $region17
    $region16: #{nonlinear_head.1} parent=1 // pred_region
      _
    $region17: #{nonlinear_head.1} parent=1 // pred_fallthru
      _
    // Predicated region
    $region18: #{nonlinear_head.1} parent=1 // pred_check
      _
    $region19: #{nonlinear_head.1} parent=1 // pred_check_branch
      %20 = sbr.rel (0) target = $region21
    $region20: #{nonlinear_head.1} parent=1 // pred_region
      _
    $region21: #{nonlinear_head.1} parent=1 // pred_fallthru
      _
    %v21 = vld [vmem:[%s0] sm:$0xff]
    %v22 = vld [vmem:[%s1] sm:$0xff]
    %v23 = vld [vmem:[%s1 + $0x8] sm:$0xff]
    %v24 = vld [vmem:[%s1 + $0x10] sm:$0xff]
    %v25 = vld [vmem:[%s1 + $0x18] sm:$0xff]
    %v26 = vld [vmem:[%s1 + $0x20] sm:$0xff]
    %v27 = vld [vmem:[%s1 + $0x28] sm:$0xff]
    %v28 = vld [vmem:[%s1 + $0x30] sm:$0xff]
    %v29 = vld [vmem:[%s1 + $0x38] sm:$0xff]
    %v30 = vld [vmem:[%s2] sm:$0x1]
    %v32 = vlaneseq
    %v33 = vshrl.u32 %v32, 7
    %v34 = vsub.s32 0, %v33
    %v35 = vrot.slane %v30, %v34
    %vm37 = vcmask 523264
    %v39 = vsel %vm37, %v21, 0
    %41 = vmatprep.subr.mxu0 0.0
    %42 = vmatpush1.msra.mxu0 0.0
    %43 = vmatprep.subr.mxu0 0.0
    %44 = vmatpush1.msra.mxu0 0.0
    %45 = vmatprep.subr.mxu0 0.0
    %46 = vmatpush1.msra.mxu0 0.0
    %47 = vmatprep.subr.mxu0 0.0
    %48 = vmatpush1.msra.mxu0 0.0
    %49 = vmatprep.subr.mxu0 0.0
    %50 = vmatpush1.msra.mxu0 0.0
    %51 = vmatprep.subr.mxu0 0.0
    %52 = vmatpush1.msra.mxu0 0.0
    %53 = vmatprep.subr.mxu0 0.0
    %54 = vmatpush1.msra.mxu0 0.0
    %55 = vmatprep.subr.mxu0 0.0
    %56 = vmatpush1.msra.mxu0 0.0
    %57 = vmatprep.subr.mxu0 0.0
    %58 = vmatpush1.msra.mxu0 %v29
    %59 = vmatprep.subr.mxu0 0.0
    %60 = vmatpush1.msra.mxu0 %v28
    %61 = vmatprep.subr.mxu0 0.0
    %62 = vmatpush1.msra.mxu0 %v27
    %63 = vmatprep.subr.mxu0 0.0
    %64 = vmatpush1.msra.mxu0 %v26
    %65 = vmatprep.subr.mxu0 0.0
    %66 = vmatpush1.msra.mxu0 %v25
    %67 = vmatprep.subr.mxu0 0.0
    %68 = vmatpush1.msra.mxu0 %v24
    %69 = vmatprep.subr.mxu0 0.0
    %70 = vmatpush1.msra.mxu0 %v23
    %71 = vmatprep.subr.mxu0 0.0
    %72 = vmatpush1.msra.mxu0 %v22
    %73 = vmatprep.subr.mxu0 0.0
    %74 = vmatpush2.msra.mxu0 0.0
    %75 = vmatprep.subr.mxu0 0.0
    %76 = vmatpush2.msra.mxu0 0.0
    %77 = vmatprep.subr.mxu0 0.0
    %78 = vmatpush2.msra.mxu0 0.0
    %79 = vmatprep.subr.mxu0 0.0
    %80 = vmatpush2.msra.mxu0 0.0
    %81 = vmatprep.subr.mxu0 0.0
    %82 = vmatpush2.msra.mxu0 0.0
    %83 = vmatprep.subr.mxu0 0.0
    %84 = vmatpush2.msra.mxu0 0.0
    %85 = vmatprep.subr.mxu0 0.0
    %86 = vmatpush2.msra.mxu0 0.0
    %87 = vmatprep.subr.mxu0 0.0
    %88 = vmatpush2.msra.mxu0 0.0
    %89 = vmatprep.subr.mxu0 0.0
    %90 = vmatpush2.msra.mxu0 0.0
    %91 = vmatprep.subr.mxu0 0.0
    %92 = vmatpush2.msra.mxu0 0.0
    %93 = vmatprep.subr.mxu0 0.0
    %94 = vmatpush2.msra.mxu0 0.0
    %95 = vmatprep.subr.mxu0 0.0
    %96 = vmatpush2.msra.mxu0 0.0
    %97 = vmatprep.subr.mxu0 0.0
    %98 = vmatpush2.msra.mxu0 0.0
    %99 = vmatprep.subr.mxu0 0.0
    %100 = vmatpush2.msra.mxu0 0.0
    %101 = vmatprep.subr.mxu0 0.0
    %102 = vmatpush2.msra.mxu0 0.0
    %103 = vmatprep.subr.mxu0 0.0
    %104 = vmatpush2.msra.mxu0 0.0
    %105 = vmatprep.mubr.f32.mxu0 0.0
    %106 = vmatmul.mubr.f32.gmra.mxu0 %v39
    %v107 = vpop.f32.mrf.mxu0
    %v108 = vadd.f32 %v35, %v107
    %v109 = vpop.f32.mrf.mxu0
    %110 = vdwg.mxu0
    %v111 = vmax.f32 %v108, 0.0
    %v112 = vld [vmem:[%s3] sm:$0xff]
    %v113 = vld [vmem:[%s3 + $0x8] sm:$0xff]
    %v114 = vld [vmem:[%s3 + $0x10] sm:$0xff]
    %v115 = vld [vmem:[%s3 + $0x18] sm:$0xff]
    %v116 = vld [vmem:[%s3 + $0x20] sm:$0xff]
    %v117 = vld [vmem:[%s3 + $0x28] sm:$0xff]
    %v118 = vld [vmem:[%s3 + $0x30] sm:$0xff]
    %v119 = vld [vmem:[%s3 + $0x38] sm:$0xff]
    %v120 = vld [vmem:[%s3 + $0x40] sm:$0xff]
    %v121 = vld [vmem:[%s3 + $0x48] sm:$0xff]
    %v122 = vld [vmem:[%s3 + $0x50] sm:$0xff]
    %v123 = vld [vmem:[%s3 + $0x58] sm:$0xff]
    %v124 = vld [vmem:[%s3 + $0x60] sm:$0xff]
    %v125 = vld [vmem:[%s3 + $0x68] sm:$0xff]
    %v126 = vld [vmem:[%s3 + $0x70] sm:$0xff]
    %v127 = vld [vmem:[%s3 + $0x78] sm:$0xff]
    %v128 = vld [vmem:[%s4] sm:$0x1]
    %v130 = vlaneseq
    %v131 = vshrl.u32 %v130, 7
    %v132 = vsub.s32 0, %v131
    %v133 = vrot.slane %v128, %v132
    %135 = vmatprep.subr.mxu0 0.0
    %136 = vmatpush1.msra.mxu0 %v127
    %137 = vmatprep.subr.mxu0 0.0
    %138 = vmatpush1.msra.mxu0 %v126
    %139 = vmatprep.subr.mxu0 0.0
    %140 = vmatpush1.msra.mxu0 %v125
    %141 = vmatprep.subr.mxu0 0.0
    %142 = vmatpush1.msra.mxu0 %v124
    %143 = vmatprep.subr.mxu0 0.0
    %144 = vmatpush1.msra.mxu0 %v123
    %145 = vmatprep.subr.mxu0 0.0
    %146 = vmatpush1.msra.mxu0 %v122
    %147 = vmatprep.subr.mxu0 0.0
    %148 = vmatpush1.msra.mxu0 %v121
    %149 = vmatprep.subr.mxu0 0.0
    %150 = vmatpush1.msra.mxu0 %v120
    %151 = vmatprep.subr.mxu0 0.0
    %152 = vmatpush1.msra.mxu0 %v119
    %153 = vmatprep.subr.mxu0 0.0
    %154 = vmatpush1.msra.mxu0 %v118
    %155 = vmatprep.subr.mxu0 0.0
    %156 = vmatpush1.msra.mxu0 %v117
    %157 = vmatprep.subr.mxu0 0.0
    %158 = vmatpush1.msra.mxu0 %v116
    %159 = vmatprep.subr.mxu0 0.0
    %160 = vmatpush1.msra.mxu0 %v115
    %161 = vmatprep.subr.mxu0 0.0
    %162 = vmatpush1.msra.mxu0 %v114
    %163 = vmatprep.subr.mxu0 0.0
    %164 = vmatpush1.msra.mxu0 %v113
    %165 = vmatprep.subr.mxu0 0.0
    %166 = vmatpush1.msra.mxu0 %v112
    %167 = vmatprep.subr.mxu0 0.0
    %168 = vmatpush2.msra.mxu0 0.0
    %169 = vmatprep.subr.mxu0 0.0
    %170 = vmatpush2.msra.mxu0 0.0
    %171 = vmatprep.subr.mxu0 0.0
    %172 = vmatpush2.msra.mxu0 0.0
    %173 = vmatprep.subr.mxu0 0.0
    %174 = vmatpush2.msra.mxu0 0.0
    %175 = vmatprep.subr.mxu0 0.0
    %176 = vmatpush2.msra.mxu0 0.0
    %177 = vmatprep.subr.mxu0 0.0
    %178 = vmatpush2.msra.mxu0 0.0
    %179 = vmatprep.subr.mxu0 0.0
    %180 = vmatpush2.msra.mxu0 0.0
    %181 = vmatprep.subr.mxu0 0.0
    %182 = vmatpush2.msra.mxu0 0.0
    %183 = vmatprep.subr.mxu0 0.0
    %184 = vmatpush2.msra.mxu0 0.0
    %185 = vmatprep.subr.mxu0 0.0
    %186 = vmatpush2.msra.mxu0 0.0
    %187 = vmatprep.subr.mxu0 0.0
    %188 = vmatpush2.msra.mxu0 0.0
    %189 = vmatprep.subr.mxu0 0.0
    %190 = vmatpush2.msra.mxu0 0.0
    %191 = vmatprep.subr.mxu0 0.0
    %192 = vmatpush2.msra.mxu0 0.0
    %193 = vmatprep.subr.mxu0 0.0
    %194 = vmatpush2.msra.mxu0 0.0
    %195 = vmatprep.subr.mxu0 0.0
    %196 = vmatpush2.msra.mxu0 0.0
    %197 = vmatprep.subr.mxu0 0.0
    %198 = vmatpush2.msra.mxu0 0.0
    %199 = vmatprep.mubr.f32.mxu0 0.0
    %200 = vmatmul.mubr.f32.gmra.mxu0 %v111
    %v201 = vpop.f32.mrf.mxu0
    %v202 = vadd.f32 %v133, %v201
    %v203 = vpop.f32.mrf.mxu0
    %204 = vdwg.mxu0
    %vm205 = vcmask 130048
    %206 = vst.msk [vmem:[#allocation2] sm:$0xff] %vm205, %v202
    // Predicated region
    $region22: #{nonlinear_head.1} parent=1 // pred_check
      _
    $region23: #{nonlinear_head.1} parent=1 // pred_check_branch
      %208 = sbr.rel (0) target = $region25
    $region24: #{nonlinear_head.1} parent=1 // pred_region
      %s210 = ssub.s32 128, 128
      %211 = vsyncadd [#allocation3], %s210
      %s213 = sshll.u32 [#allocation2], 4
      %s214 = int_to_ptr.vmem [resolvable:$true] %s213
      %216 = dma.vmem_to_hbm [thread:$0]  %s214, 128, %s5, [#allocation3]
    $region25: #{nonlinear_head.1} parent=1 // pred_fallthru
      _
    // Predicated region
    $region26: #{nonlinear_head.1} parent=1 // pred_check
      _
    $region27: #{nonlinear_head.1} parent=1 // pred_check_branch
      %218 = sbr.rel (0) target = $region29
    $region28: #{nonlinear_head.1} parent=1 // pred_region
      %219 = dma.done [#allocation3], 128
    $region29: #{nonlinear_head.1} parent=1 // pred_fallthru
      _
    %220 = vsyncpa [#allocation3], 1

</llo_original>
